<compile_context>
chip_gen: v5e
topology: v5e:2x2
jax: 0.10.0
libtpu: 0.0.40
codegen_flags: <defaults>
</compile_context>

<pallas_src>
import jax
import jax.numpy as jnp
from jax.experimental import pallas as pl
from jax.experimental.pallas import tpu as pltpu


def _round_up(v, m):
    return (v + m - 1) // m * m


def _vmem_capacity_bytes():
    try:
        return int(pltpu.get_tpu_info().vmem_capacity_bytes)
    except Exception:
        return 64 << 20  # conservative (v7x per-TensorCore VMEM)


# ---------------------------------------------------------------------------
# Kernels
# ---------------------------------------------------------------------------

def _level_kernel_single(x_ref, supp_ref, alpha_ref, bias_ref, o_ref):
    # Whole support bank resident in VMEM: no reduction axis, no accumulator.
    # exponent = -||x - xk||^2 / (2 sigma^2), straight off the MXU (augmented operands).
    expo = jnp.dot(x_ref[...], supp_ref[...], preferred_element_type=jnp.float32)
    expo = jnp.minimum(expo, 0.0)                    # true squared distance >= 0
    k = jnp.exp(expo).astype(alpha_ref.dtype)        # EUP; bf16 feed for 2nd MXU pass
    out = jnp.dot(k, alpha_ref[...], preferred_element_type=jnp.float32) + bias_ref[...]
    o_ref[...] = out.astype(o_ref.dtype)


def _level_kernel_tiled(x_ref, supp_ref, alpha_ref, bias_ref, o_ref, acc_ref):
    # Support axis tiled (huge kernel banks): f32 VMEM accumulator across j.
    j = pl.program_id(1)
    expo = jnp.dot(x_ref[...], supp_ref[...], preferred_element_type=jnp.float32)
    expo = jnp.minimum(expo, 0.0)
    k = jnp.exp(expo).astype(alpha_ref.dtype)
    partial = jnp.dot(k, alpha_ref[...], preferred_element_type=jnp.float32)

    @pl.when(j == 0)
    def _init():
        acc_ref[...] = partial

    @pl.when(j > 0)
    def _accum():
        acc_ref[...] += partial

    @pl.when(j == pl.num_programs(1) - 1)
    def _finalize():
        o_ref[...] = (acc_ref[...] + bias_ref[...]).astype(o_ref.dtype)


# ---------------------------------------------------------------------------
# Support-side preprocessing (hoist: call once at Level init, reuse per forward)
# ---------------------------------------------------------------------------

def prepare_level_params(support, alpha, bias, *, sigma=1.0, tile_m=None):
    """Precompute the grid-invariant, support-side operands of the dual forward.

    Returns a dict usable by level_forward(); sigma and the support norms are folded
    into an augmented, pre-transposed support matrix so the in-kernel exponent is a
    single MXU matmul.
    """
    m, d = support.shape
    m_a, size_out = alpha.shape
    assert m_a == m
    assert bias.shape == (1, size_out)

    f32 = jnp.float32
    support = support.astype(f32)
    alpha = alpha.astype(f32)
    bias = bias.astype(f32)

    inv_sigma_sq = 1.0 / (sigma * sigma)
    half_inv_sigma_sq = 0.5 * inv_sigma_sq

    d_aug = _round_up(d + 2, 8)                  # augmented + sublane-aligned K depth
    out_pad = _round_up(size_out, 128)           # lane-dense output / alpha columns
    m_pad0 = _round_up(m, 128)

    # ---- VMEM-budget-driven support tiling (generation-aware via get_tpu_info) ----
    vmem_cap = _vmem_capacity_bytes()
    resident_budget = vmem_cap // 4              # 32 MiB on v5e/v6e, 16 MiB on v7x

    def _supp_bytes(tm):                         # f32 supp_aug slab + bf16 alpha slab
        return d_aug * tm * 4 + tm * out_pad * 2

    if tile_m is None:
        if _supp_bytes(m_pad0) <= resident_budget:
            tile_m = m_pad0                      # whole bank resident -> single-pass kernel
        else:
            tile_m = 128
            while tile_m < 4096 and _supp_bytes(tile_m * 2) * 2 <= resident_budget:
                tile_m *= 2
    tile_m = max(128, _round_up(min(tile_m, m_pad0), 128))
    m_pad = _round_up(m_pad0, tile_m)

    support_p = jnp.pad(support, ((0, m_pad - m), (0, 0)))          # zero support rows

    # Augmented, pre-transposed, pre-scaled support matrix (d_aug, m_pad):
    #   rows 0..d-1 : support^T / sigma^2
    #   row  d      : -||support||^2 / (2 sigma^2)
    #   row  d+1    : 1
    #   rows d+2..  : 0 (alignment padding)
    supp_scaled = support_p.T * inv_sigma_sq
    supp_norm = -(jnp.sum(support_p * support_p, axis=-1) * half_inv_sigma_sq)[None, :]
    ones_row = jnp.ones((1, m_pad), f32)
    supp_aug = jnp.concatenate([supp_scaled, supp_norm, ones_row], axis=0)
    supp_aug = jnp.pad(supp_aug, ((0, d_aug - (d + 2)), (0, 0)))

    # alpha in bf16 (halves DMA/VMEM; f32 accumulation inside the kernel).
    # Zero-padded rows nullify the (nonzero) K values of padded support columns.
    alpha_p = jnp.pad(alpha, ((0, m_pad - m), (0, out_pad - size_out))).astype(jnp.bfloat16)
    bias_p = jnp.pad(bias, ((0, 0), (0, out_pad - size_out)))

    return dict(
        supp_aug=supp_aug,                 # (d_aug, m_pad) f32
        alpha=alpha_p,                     # (m_pad, out_pad) bf16
        bias=bias_p,                       # (1, out_pad) f32
        size_in=d,
        size_out=size_out,
        tile_m=tile_m,
        half_inv_sigma_sq=half_inv_sigma_sq,
    )


# ---------------------------------------------------------------------------
# Forward
# ---------------------------------------------------------------------------

def level_forward(x, params, *, tile_n=512):
    """Dual-representation Level forward:

        exp(-||x - support||^2 / (2 sigma^2)) @ alpha + bias
    """
    supp_aug = params["supp_aug"]
    alpha_p = params["alpha"]
    bias_p = params["bias"]
    size_out = params["size_out"]
    tile_m = params["tile_m"]
    half_inv_sigma_sq = params["half_inv_sigma_sq"]

    n, d = x.shape
    assert d == params["size_in"]
    d_aug, m_pad = supp_aug.shape
    out_pad = alpha_p.shape[1]
    assert alpha_p.shape[0] == m_pad
    m_tiles = m_pad // tile_m
    out_dtype = x.dtype

    # ---- row tiling: big tiles, but keep >= 2 row tiles when N allows it (v7x megacore)
    n_align = 16                                           # safe for f32 and bf16 blocks
    n_ceil = _round_up(n, n_align)
    tile_n = max(n_align, _round_up(min(tile_n, n_ceil), n_align))
    if n_ceil >= 2 * n_align:
        tile_n = min(tile_n, _round_up(pl.cdiv(n, 2), n_align))
    n_pad = _round_up(n, tile_n)
    n_tiles = n_pad // tile_n

    # ---- x-side augmentation: [x, 1, -||x||^2/(2 sigma^2), 0...] -------------------
    xf = x.astype(jnp.float32)
    ones_col = jnp.ones((n, 1), jnp.float32)
    xn = -jnp.sum(xf * xf, axis=-1, keepdims=True) * half_inv_sigma_sq
    x_aug = jnp.concatenate([xf, ones_col, xn], axis=-1)
    x_aug = jnp.pad(x_aug, ((0, n_pad - n), (0, d_aug - (d + 2))))

    out_isize = jnp.dtype(out_dtype).itemsize

    # ---- specs / kernel selection ---------------------------------------------------
    invariant = pl.Buffered(1)
    if m_tiles == 1:
        kernel = _level_kernel_single
        grid = (n_tiles,)
        in_specs = [
            pl.BlockSpec((tile_n, d_aug), lambda i: (i, 0)),
            pl.BlockSpec((d_aug, m_pad), lambda i: (0, 0), pipeline_mode=invariant),
            pl.BlockSpec((m_pad, out_pad), lambda i: (0, 0), pipeline_mode=invariant),
            pl.BlockSpec((1, out_pad), lambda i: (0, 0), pipeline_mode=invariant),
        ]
        out_specs = pl.BlockSpec((tile_n, out_pad), lambda i: (i, 0))
        scratch_shapes = []
        dims = ("parallel",)
    else:
        kernel = _level_kernel_tiled
        grid = (n_tiles, m_tiles)
        in_specs = [
            pl.BlockSpec((tile_n, d_aug), lambda i, j: (i, 0)),
            pl.BlockSpec((d_aug, tile_m), lambda i, j: (0, j)),
            pl.BlockSpec((tile_m, out_pad), lambda i, j: (j, 0)),
            pl.BlockSpec((1, out_pad), lambda i, j: (0, 0), pipeline_mode=invariant),
        ]
        out_specs = pl.BlockSpec((tile_n, out_pad), lambda i, j: (i, 0))
        scratch_shapes = [pltpu.VMEM((tile_n, out_pad), jnp.float32)]
        dims = ("parallel", "arbitrary")

    # ---- VMEM budget estimate -> explicit scoped limit -------------------------------
    def _buf_bytes(rows, cols, itemsize, nbuf):
        return _round_up(rows, 8) * _round_up(cols, 128) * itemsize * nbuf

    if m_tiles == 1:
        vmem_est = (_buf_bytes(tile_n, d_aug, 4, 2)
                    + _buf_bytes(d_aug, m_pad, 4, 1)
                    + _buf_bytes(m_pad, out_pad, 2, 1)
                    + _buf_bytes(1, out_pad, 4, 1)
                    + _buf_bytes(tile_n, out_pad, out_isize, 2))
    else:
        vmem_est = (_buf_bytes(tile_n, d_aug, 4, 2)
                    + _buf_bytes(d_aug, tile_m, 4, 2)
                    + _buf_bytes(tile_m, out_pad, 2, 2)
                    + _buf_bytes(1, out_pad, 4, 1)
                    + _buf_bytes(tile_n, out_pad, out_isize, 2)
                    + _buf_bytes(tile_n, out_pad, 4, 1))      # accumulator scratch
    vmem_cap = _vmem_capacity_bytes()
    vmem_limit = int(min(max(vmem_est * 3 // 2 + (2 << 20), 16 << 20), vmem_cap * 9 // 10))

    # ---- cost hint for XLA scheduling -------------------------------------------------
    supp_streams = 1 if m_tiles == 1 else n_tiles
    cost = pl.CostEstimate(
        flops=int(2 * n_pad * m_pad * (d_aug + out_pad)),
        transcendentals=int(n_pad * m_pad),
        bytes_accessed=int(n_pad * d_aug * 4
                           + supp_streams * (d_aug * m_pad * 4 + m_pad * out_pad * 2)
                           + out_pad * 4
                           + n_pad * out_pad * out_isize),
    )

    out_padded = pl.pallas_call(
        kernel,
        out_shape=jax.ShapeDtypeStruct((n_pad, out_pad), out_dtype),
        grid_spec=pltpu.PrefetchScalarGridSpec(
            num_scalar_prefetch=0,
            grid=grid,
            in_specs=in_specs,
            out_specs=out_specs,
            scratch_shapes=scratch_shapes,
        ),
        compiler_params=pltpu.CompilerParams(
            dimension_semantics=dims,
            vmem_limit_bytes=vmem_limit,
        ),
        cost_estimate=cost,
    )(x_aug, supp_aug, alpha_p, bias_p)

    return out_padded[:n, :size_out]


def level_forward_ref(x, support, alpha, bias, *, sigma=1.0):
    # Exact (direct-difference) RBF reference.
    d2 = jnp.sum((x[:, None, :] - support[None, :, :]) ** 2, axis=-1)
    k = jnp.exp(-d2 / (2.0 * sigma * sigma))
    return k @ alpha + bias


if __name__ == "__main__":
    # Small shapes consistent with Level.__init__ (size_in, size_out, init_kernels).
    N = 112             # batch of input points
    SIZE_IN = 32        # kwargs['size_in']
    INIT_KERNELS = 200  # kwargs['init_kernels'] (number of support vectors)
    SIZE_OUT = 4        # kwargs['size_out']
    SIGMA = 4.0

    key = jax.random.PRNGKey(0)
    kx, ks, ka, kb = jax.random.split(key, 4)
    x = jax.random.normal(kx, (N, SIZE_IN), dtype=jnp.float32)
    support = jax.random.normal(ks, (INIT_KERNELS, SIZE_IN), dtype=jnp.float32)
    alpha = jax.random.normal(ka, (INIT_KERNELS, SIZE_OUT), dtype=jnp.float32) * 0.1
    bias = jax.random.normal(kb, (1, SIZE_OUT), dtype=jnp.float32) * 0.01

    # TODO(synk): IDXK stochastic support-vector subsetting / live_update of the kernel
    # bank are stateful training-time mechanics, not part of the pure forward compute;
    # idx_kernels = all kernels is assumed here.

    ref = level_forward_ref(x, support, alpha, bias, sigma=SIGMA)

    # Support-side preprocessing hoisted out of the per-call path (done once at "init").
    params = prepare_level_params(support, alpha, bias, sigma=SIGMA)

    # Default path: whole support bank resident in VMEM -> single-pass kernel, no accumulator.
    out_resident = jax.block_until_ready(level_forward(x, params))
    assert out_resident.shape == (N, SIZE_OUT)
    assert jnp.allclose(out_resident, ref, atol=5e-3, rtol=5e-3), "mismatch (resident path)"

    # Same prepared params, small row tiles (multiple row tiles on the 'parallel' axis).
    out_rows = jax.block_until_ready(level_forward(x, params, tile_n=32))
    assert out_rows.shape == (N, SIZE_OUT)
    assert jnp.allclose(out_rows, ref, atol=5e-3, rtol=5e-3), "mismatch (row-tiled path)"

    # Forced support-axis tiling (exercises the K-tiled accumulator kernel).
    params_tiled = prepare_level_params(support, alpha, bias, sigma=SIGMA, tile_m=128)
    out_tiled = jax.block_until_ready(level_forward(x, params_tiled, tile_n=64))
    assert out_tiled.shape == (N, SIZE_OUT)
    assert jnp.allclose(out_tiled, ref, atol=5e-3, rtol=5e-3), "mismatch (support-tiled path)"

    print("KERNEL_OK")
</pallas_src>

<mosaic_0001>
module attributes {stable_mosaic.version = 11 : i64} {
  func.func @_level_kernel_single(%arg0: i32, %arg1: memref<64x40xf32, #tpu.memory_space<vmem>>, %arg2: memref<40x256xf32, #tpu.memory_space<vmem>>, %arg3: memref<256x128xbf16, #tpu.memory_space<vmem>>, %arg4: memref<1x128xf32, #tpu.memory_space<vmem>>, %arg5: memref<64x128xf32, #tpu.memory_space<vmem>>) attributes {dimension_semantics = [#tpu.dimension_semantics<parallel>], iteration_bounds = array<i64: 2>, scalar_prefetch = 0 : i64, scratch_operands = 0 : i64, tpu.core_type = #tpu.core_type<tc>, window_params = [{transform_indices = @transform_0, window_bounds = array<i64: 64, 40>}, {pipeline_mode = #tpu.pipeline_mode<synchronous>, transform_indices = @transform_1, window_bounds = array<i64: 40, 256>}, {pipeline_mode = #tpu.pipeline_mode<synchronous>, transform_indices = @transform_2, window_bounds = array<i64: 256, 128>}, {pipeline_mode = #tpu.pipeline_mode<synchronous>, transform_indices = @transform_3, window_bounds = array<i64: 1, 128>}, {transform_indices = @transform_4, window_bounds = array<i64: 64, 128>}]} {
    %c0 = arith.constant 0 : index
    %c0_0 = arith.constant 0 : index
    %0 = vector.load %arg1[%c0, %c0_0] : memref<64x40xf32, #tpu.memory_space<vmem>>, vector<64x40xf32>
    %c0_1 = arith.constant 0 : index
    %c0_2 = arith.constant 0 : index
    %1 = vector.load %arg2[%c0_1, %c0_2] : memref<40x256xf32, #tpu.memory_space<vmem>>, vector<40x256xf32>
    %cst = arith.constant dense<0.000000e+00> : vector<64x256xf32>
    %2 = tpu.matmul %0, %1, %cst {dimension_numbers = #tpu.dot_dimension_numbers<[1], [0], [0], [1], [0, 0, 1, 1], [], []>} : vector<64x40xf32>, vector<40x256xf32>, vector<64x256xf32> -> vector<64x256xf32>
    %cst_3 = arith.constant 0.000000e+00 : f32
    %3 = vector.broadcast %cst_3 : f32 to vector<64x256xf32>
    %4 = arith.minimumf %2, %3 : vector<64x256xf32>
    %5 = math.exp %4 : vector<64x256xf32>
    %6 = arith.truncf %5 : vector<64x256xf32> to vector<64x256xbf16>
    %c0_4 = arith.constant 0 : index
    %c0_5 = arith.constant 0 : index
    %7 = vector.load %arg3[%c0_4, %c0_5] : memref<256x128xbf16, #tpu.memory_space<vmem>>, vector<256x128xbf16>
    %cst_6 = arith.constant dense<0.000000e+00> : vector<64x128xf32>
    %8 = tpu.matmul %6, %7, %cst_6 {dimension_numbers = #tpu.dot_dimension_numbers<[1], [0], [0], [1], [0, 0, 1, 1], [], []>} : vector<64x256xbf16>, vector<256x128xbf16>, vector<64x128xf32> -> vector<64x128xf32>
    %c0_7 = arith.constant 0 : index
    %c0_8 = arith.constant 0 : index
    %9 = vector.load %arg4[%c0_7, %c0_8] : memref<1x128xf32, #tpu.memory_space<vmem>>, vector<1x128xf32>
    %10 = vector.broadcast %9 : vector<1x128xf32> to vector<64x128xf32>
    %11 = arith.addf %8, %10 : vector<64x128xf32>
    %c0_9 = arith.constant 0 : index
    %c0_10 = arith.constant 0 : index
    %12 = vector.load %arg5[%c0_9, %c0_10] : memref<64x128xf32, #tpu.memory_space<vmem>>, vector<64x128xf32>
    tpu.vector_store %arg5[%c0_9, %c0_10], %11 {strides = array<i32>} : memref<64x128xf32, #tpu.memory_space<vmem>>, vector<64x128xf32>,
    return
  }
  func.func @transform_0(%arg0: i32) -> (i32, i32) {
    %c0_i32 = arith.constant 0 : i32
    %c0_i32_0 = arith.constant 0 : i32
    return %arg0, %c0_i32 : i32, i32
  }
  func.func @transform_1(%arg0: i32) -> (i32, i32) {
    %c0_i32 = arith.constant 0 : i32
    %c0_i32_0 = arith.constant 0 : i32
    %c0_i32_1 = arith.constant 0 : i32
    return %c0_i32, %c0_i32_0 : i32, i32
  }
  func.func @transform_2(%arg0: i32) -> (i32, i32) {
    %c0_i32 = arith.constant 0 : i32
    %c0_i32_0 = arith.constant 0 : i32
    %c0_i32_1 = arith.constant 0 : i32
    return %c0_i32, %c0_i32_0 : i32, i32
  }
  func.func @transform_3(%arg0: i32) -> (i32, i32) {
    %c0_i32 = arith.constant 0 : i32
    %c0_i32_0 = arith.constant 0 : i32
    %c0_i32_1 = arith.constant 0 : i32
    return %c0_i32, %c0_i32_0 : i32, i32
  }
  func.func @transform_4(%arg0: i32) -> (i32, i32) {
    %c0_i32 = arith.constant 0 : i32
    %c0_i32_0 = arith.constant 0 : i32
    return %arg0, %c0_i32 : i32, i32
  }
}

</mosaic_0001>

<llo_original>
// kernel: tpu_custom_call.1
$region0: #{tpu_custom_call.1}
  #allocation0 [shape = 'u32[]', space=smem, size = 0x4, offset = 0x4, fixed_abs, tag = 'smem constant byte address 0x4 - core index']
  #allocation1 [shape = 'u32[72,128]{1,0:T(1,128)}', space=vmem, size = 0x9000, scoped, tag = 'internal scratch']
  %s0 = inlined_call_operand.vmem [shape: f32[128,40], index: 0, kind: input, shape index: {}]
  %s1 = inlined_call_operand.hbm [shape: f32[40,256], index: 1, kind: input, shape index: {}]
  %s2 = inlined_call_operand.vmem [shape: bf16[256,128], index: 2, kind: input, shape index: {}]
  %s3 = inlined_call_operand.vmem [shape: f32[1,128], index: 3, kind: input, shape index: {}]
  %s4 = inlined_call_operand.hbm [shape: f32[128,128], index: 4, kind: output, shape index: {}]
  %s5 = sld [smem:[#allocation0]]
  $region53: #{tpu_custom_call.1} parent=0
    _
  %s7 = ssub.s32 1, %s5
  %s8 = scalar_select 0, %s7, %s5
  $region1: #{tpu_custom_call.1} parent=0
    #allocation2 [shape = 'u8[40960]{0}', space=vmem, size = 0xa000, scoped, tag = 'input window, operand 1, single buffered']
    #allocation3 [shape = 's32[2]{0}', space=sflag, size = 0x8, scoped, tag = 'scoped memory for tpu_custom_call.1']
    #allocation4 [shape = 's32[2]{0}', space=sflag, size = 0x8, scoped, tag = 'scoped memory for tpu_custom_call.1']
    #allocation5 [shape = 'u8[65536]{0}', space=vmem, size = 0x10000, scoped, tag = 'output window, operand 0']
    %9 = vsyncpa [#allocation3], 0
    %10 = vsyncpa [#allocation4], 0
    %s11 = scalar_lea.sflag [#allocation4], 1
    %12 = vsyncpa %s11, 0
    loop: start=0, step=1, limit=4
    $region2: #{tpu_custom_call.1} parent=1 // loop_pre_header
      _
    $region3: #{tpu_custom_call.1} parent=1 // loop_header
      %s14 = sphi 0, %s18
      %p15 = scmp.ge.s32.totalorder %s14, 4
      %s24 = sphi 0, %s26
      %s27 = sphi 0, %s24
      %s28 = sphi 0, %s27
      %s44 = sphi 0, %s28
      %s48 = sphi 0, %s48
      %s50 = sphi 0, %s48
      %s51 = sphi 0, %s50
      %s65 = sphi 0, %s51
      %s69 = sphi 0, %s69
      %s71 = sphi 0, %s69
      %s72 = sphi 0, %s71
      %s86 = sphi 0, %s72
      %s90 = sphi 0, %s90
      %s92 = sphi 0, %s90
      %s93 = sphi 0, %s92
      %s107 = sphi 0, %s93
      %s113 = sphi 0, %s115
      %s116 = sphi 0, %s113
      %s117 = sphi 0, %s116
      %s133 = sphi 0, %s117
    $region4: #{tpu_custom_call.1} parent=1 // loop_header_branch
      %17 = sbr.rel (%p15) target = $region8
    $region5: #{tpu_custom_call.1} parent=1 // loop_body
      %s19 = ssub.s32 %s14, 1
      %s20 = ssub.s32 %s14, 2
      %s21 = sadd.s32 %s14, 1
      %s22 = ssub.s32 %s14, %s21
      %p23 = scmp.eq.s32.totalorder %s22, 0
      %s25 = sadd.s32 %s24, 1
      %s26 = scalar_select %p23, %s24, %s25
      %p29 = pneg %p23
      %p30 = scmp.eq.s32.totalorder %s14, 1
      %p31 = por %p29, %p30
      %p32 = scmp.ne.s32.totalorder %s24, %s27
      %p33 = scmp.eq.s32.totalorder %s14, 0
      %p34 = por %p32, %p33
      %p35 = scmp.ne.s32.totalorder %s24, %s27
      %p36 = scmp.eq.s32.totalorder %s19, 1
      %p37 = por %p35, %p36
      %p38 = scmp.ne.s32.totalorder %s27, %s28
      %p39 = scmp.eq.s32.totalorder %s19, 0
      %p40 = por %p38, %p39
      %p41 = scmp.ne.s32.totalorder %s27, %s28
      %p42 = scmp.eq.s32.totalorder %s20, 1
      %p43 = por %p41, %p42
      %p45 = scmp.ne.s32.totalorder %s28, %s44
      %p46 = scmp.eq.s32.totalorder %s20, 0
      %p47 = por %p45, %p46
      %s49 = sadd.s32 %s48, 1
      %p52 = scmp.eq.s32.totalorder %s14, 1
      %p53 = scmp.ne.s32.totalorder %s48, %s50
      %p54 = scmp.eq.s32.totalorder %s14, 0
      %p55 = por %p53, %p54
      %p56 = scmp.ne.s32.totalorder %s48, %s50
      %p57 = scmp.eq.s32.totalorder %s19, 1
      %p58 = por %p56, %p57
      %p59 = scmp.ne.s32.totalorder %s50, %s51
      %p60 = scmp.eq.s32.totalorder %s19, 0
      %p61 = por %p59, %p60
      %p62 = scmp.ne.s32.totalorder %s50, %s51
      %p63 = scmp.eq.s32.totalorder %s20, 1
      %p64 = por %p62, %p63
      %p66 = scmp.ne.s32.totalorder %s51, %s65
      %p67 = scmp.eq.s32.totalorder %s20, 0
      %p68 = por %p66, %p67
      %s70 = sadd.s32 %s69, 1
      %p73 = scmp.eq.s32.totalorder %s14, 1
      %p74 = scmp.ne.s32.totalorder %s69, %s71
      %p75 = scmp.eq.s32.totalorder %s14, 0
      %p76 = por %p74, %p75
      %p77 = scmp.ne.s32.totalorder %s69, %s71
      %p78 = scmp.eq.s32.totalorder %s19, 1
      %p79 = por %p77, %p78
      %p80 = scmp.ne.s32.totalorder %s71, %s72
      %p81 = scmp.eq.s32.totalorder %s19, 0
      %p82 = por %p80, %p81
      %p83 = scmp.ne.s32.totalorder %s71, %s72
      %p84 = scmp.eq.s32.totalorder %s20, 1
      %p85 = por %p83, %p84
      %p87 = scmp.ne.s32.totalorder %s72, %s86
      %p88 = scmp.eq.s32.totalorder %s20, 0
      %p89 = por %p87, %p88
      %s91 = sadd.s32 %s90, 1
      %p94 = scmp.eq.s32.totalorder %s14, 1
      %p95 = scmp.ne.s32.totalorder %s90, %s92
      %p96 = scmp.eq.s32.totalorder %s14, 0
      %p97 = por %p95, %p96
      %p98 = scmp.ne.s32.totalorder %s90, %s92
      %p99 = scmp.eq.s32.totalorder %s19, 1
      %p100 = por %p98, %p99
      %p101 = scmp.ne.s32.totalorder %s92, %s93
      %p102 = scmp.eq.s32.totalorder %s19, 0
      %p103 = por %p101, %p102
      %p104 = scmp.ne.s32.totalorder %s92, %s93
      %p105 = scmp.eq.s32.totalorder %s20, 1
      %p106 = por %p104, %p105
      %p108 = scmp.ne.s32.totalorder %s93, %s107
      %p109 = scmp.eq.s32.totalorder %s20, 0
      %p110 = por %p108, %p109
      %s111 = ssub.s32 %s14, %s21
      %p112 = scmp.eq.s32.totalorder %s111, 0
      %s114 = sadd.s32 %s113, 1
      %s115 = scalar_select %p112, %s113, %s114
      %p118 = pneg %p112
      %p119 = scmp.eq.s32.totalorder %s14, 1
      %p120 = por %p118, %p119
      %p121 = scmp.ne.s32.totalorder %s113, %s116
      %p122 = scmp.eq.s32.totalorder %s14, 0
      %p123 = por %p121, %p122
      %p124 = scmp.ne.s32.totalorder %s113, %s116
      %p125 = scmp.eq.s32.totalorder %s19, 1
      %p126 = por %p124, %p125
      %p127 = scmp.ne.s32.totalorder %s116, %s117
      %p128 = scmp.eq.s32.totalorder %s19, 0
      %p129 = por %p127, %p128
      %p130 = scmp.ne.s32.totalorder %s116, %s117
      %p131 = scmp.eq.s32.totalorder %s20, 1
      %p132 = por %p130, %p131
      %p134 = scmp.ne.s32.totalorder %s117, %s133
      %p135 = scmp.eq.s32.totalorder %s20, 0
      %p136 = por %p134, %p135
      %p137 = scmp.le.s32.totalorder 1, %s14
      %p138 = scmp.lt.s32.totalorder %s14, 3
      %p139 = pnand %p137, %p138
      %p140 = pneg %p139
      // Predicated region
      $region9: #{tpu_custom_call.1} parent=5 // pred_check
        _
      $region10: #{tpu_custom_call.1} parent=5 // pred_check_branch
        %142 = sbr.rel (%p139) target = $region12
      $region11: #{tpu_custom_call.1} parent=5 // pred_region
        %s143 = ssub.s32 %s14, 1
        // Predicated region
        $region13: #{tpu_custom_call.1} parent=11 // pred_check
          %p144 = pneg %p61
        $region14: #{tpu_custom_call.1} parent=11 // pred_check_branch
          %146 = sbr.rel (%p144) target = $region16
        $region15: #{tpu_custom_call.1} parent=11 // pred_region
          %148 = vsyncadd [#allocation3], 0
          %s149 = sshll.u32 %s1, 4
          %s150 = int_to_ptr.hbm [resolvable:$true] %s149
          %s151 = sshll.u32 [#allocation2], 4
          %s152 = int_to_ptr.vmem [resolvable:$true] %s151
          %157 = dma.hbm_to_vmem [thread:$0]  %s150, 1280, %s152, [#allocation3], 256, 256, 16
        $region16: #{tpu_custom_call.1} parent=11 // pred_fallthru
          _
        // Predicated region
        $region17: #{tpu_custom_call.1} parent=11 // pred_check
          %p158 = pneg %p82
        $region18: #{tpu_custom_call.1} parent=11 // pred_check_branch
          %160 = sbr.rel (%p158) target = $region20
        $region19: #{tpu_custom_call.1} parent=11 // pred_region
          _
        $region20: #{tpu_custom_call.1} parent=11 // pred_fallthru
          _
        // Predicated region
        $region21: #{tpu_custom_call.1} parent=11 // pred_check
          %p161 = pneg %p103
        $region22: #{tpu_custom_call.1} parent=11 // pred_check_branch
          %163 = sbr.rel (%p161) target = $region24
        $region23: #{tpu_custom_call.1} parent=11 // pred_region
          _
        $region24: #{tpu_custom_call.1} parent=11 // pred_fallthru
          _
      $region12: #{tpu_custom_call.1} parent=5 // pred_fallthru
        _
      %p164 = scmp.lt.s32.totalorder %s14, 2
      // Predicated region
      $region25: #{tpu_custom_call.1} parent=5 // pred_check
        %p165 = pneg %p164
      $region26: #{tpu_custom_call.1} parent=5 // pred_check_branch
        %167 = sbr.rel (%p165) target = $region28
      $region27: #{tpu_custom_call.1} parent=5 // pred_region
        // Predicated region
        $region29: #{tpu_custom_call.1} parent=27 // pred_check
          %p168 = pneg %p34
        $region30: #{tpu_custom_call.1} parent=27 // pred_check_branch
          %170 = sbr.rel (%p168) target = $region32
        $region31: #{tpu_custom_call.1} parent=27 // pred_region
          %s171 = smul.u32 8, %s14
          %p172 = scmp.lt.s32.totalorder %s171, 15
          %s173 = scalar_select %p172, %s171, 15
          %s174 = smul.addr %s173, 8
          %s175 = scalar_lea.vmem %s0, %s174
          %s176 = smul.u32 8, %s14
        $region32: #{tpu_custom_call.1} parent=27 // pred_fallthru
          _
      $region28: #{tpu_custom_call.1} parent=5 // pred_fallthru
        _
      %p177 = scmp.le.s32.totalorder 1, %s14
      %p178 = scmp.lt.s32.totalorder %s14, 3
      %p179 = pnand %p177, %p178
      %p180 = pneg %p179
      // Predicated region
      $region33: #{tpu_custom_call.1} parent=5 // pred_check
        _
      $region34: #{tpu_custom_call.1} parent=5 // pred_check_branch
        %182 = sbr.rel (%p179) target = $region36
      $region35: #{tpu_custom_call.1} parent=5 // pred_region
        %s183 = ssub.s32 %s14, 1
        // Predicated region
        $region37: #{tpu_custom_call.1} parent=35 // pred_check
          %p184 = pneg %p61
        $region38: #{tpu_custom_call.1} parent=35 // pred_check_branch
          %186 = sbr.rel (%p184) target = $region40
        $region39: #{tpu_custom_call.1} parent=35 // pred_region
          %188 = dma.done [#allocation3], 1280
        $region40: #{tpu_custom_call.1} parent=35 // pred_fallthru
          _
        %s189 = smul.u32 8, %s19
        %p190 = scmp.lt.s32.totalorder %s189, 15
        %s191 = scalar_select %p190, %s189, 15
        %s192 = smul.addr %s191, 8
        %s193 = scalar_lea.vmem %s0, %s192
        %p194 = pneg %p40
        %p195 = pneg %p37
        %p196 = pneg %p61
        %p197 = pneg %p58
        %p198 = pneg %p82
        %p199 = pneg %p79
        %p200 = pneg %p103
        %p201 = pneg %p100
        %p202 = pneg %p129
        %p203 = pneg %p126
        %s204 = sand.u32 %s116, 1
        %s205 = scalar_lea.sflag [#allocation4], %s204
        %s206 = sand.u32 %s116, 1
        %s207 = smul.addr %s206, 64
        %s208 = scalar_lea.vmem [#allocation5], %s207
        %s209 = smul.u32 8, %s19
        %p210 = scmp.lt.s32.totalorder %s209, 15
        %s211 = scalar_select %p210, %s209, 15
        %s212 = smul.addr %s211, 8
        %s213 = scalar_lea.vmem %s0, %s212
        %s214 = smul.u32 8, %s19
        %s215 = smul.u32 8, %s19
        %v216 = vld [vmem:[%s213] sm:$0xff]
        %v217 = vld [vmem:[%s213 + $0x8] sm:$0xff]
        %v218 = vld [vmem:[%s213 + $0x10] sm:$0xff]
        %v219 = vld [vmem:[%s213 + $0x18] sm:$0xff]
        %v220 = vld [vmem:[%s213 + $0x20] sm:$0xff]
        %v221 = vld [vmem:[%s213 + $0x28] sm:$0xff]
        %v222 = vld [vmem:[%s213 + $0x30] sm:$0xff]
        %v223 = vld [vmem:[%s213 + $0x38] sm:$0xff]
        %v224 = vld [vmem:[#allocation2] sm:$0xff]
        %v225 = vld [vmem:[#allocation2 + $0x8] sm:$0xff]
        %v226 = vld [vmem:[#allocation2 + $0x10] sm:$0xff]
        %v227 = vld [vmem:[#allocation2 + $0x18] sm:$0xff]
        %v228 = vld [vmem:[#allocation2 + $0x20] sm:$0xff]
        %v229 = vld [vmem:[#allocation2 + $0x28] sm:$0xff]
        %v230 = vld [vmem:[#allocation2 + $0x30] sm:$0xff]
        %v231 = vld [vmem:[#allocation2 + $0x38] sm:$0xff]
        %v232 = vld [vmem:[#allocation2 + $0x40] sm:$0xff]
        %v233 = vld [vmem:[#allocation2 + $0x48] sm:$0xff]
        %vm234 = vcmask 326656
        %v236 = vsel %vm234, %v216, 0
        %v239 = vsel %vm234, %v217, 0
        %v242 = vsel %vm234, %v218, 0
        %v245 = vsel %vm234, %v219, 0
        %v248 = vsel %vm234, %v220, 0
        %v251 = vsel %vm234, %v221, 0
        %v254 = vsel %vm234, %v222, 0
        %v257 = vsel %vm234, %v223, 0
        %259 = vmatpush.msra.mxu0 0.0
        %260 = vmatpush.msra.mxu0 0.0
        %261 = vmatpush.msra.mxu0 0.0
        %262 = vmatpush.msra.mxu0 0.0
        %263 = vmatpush.msra.mxu0 0.0
        %264 = vmatpush.msra.mxu0 0.0
        %265 = vmatpush.msra.mxu0 0.0
        %266 = vmatpush.msra.mxu0 0.0
        %267 = vmatpush.msra.mxu0 0.0
        %268 = vmatpush.msra.mxu0 0.0
        %269 = vmatpush.msra.mxu0 0.0
        %270 = vmatpush.msra.mxu0 %v232
        %271 = vmatpush.msra.mxu0 %v230
        %272 = vmatpush.msra.mxu0 %v228
        %273 = vmatpush.msra.mxu0 %v226
        %274 = vmatpush.msra.mxu0 %v224
        %275 = vmatmul.f32.gmra.mxu0 %v236
        %v276 = vpop.f32.mrf.mxu0
        %v277 = vadd.f32 0.0, %v276
        %278 = vmatmul.f32.gmra.mxu0 %v239
        %v279 = vpop.f32.mrf.mxu0
        %v280 = vadd.f32 0.0, %v279
        %281 = vmatmul.f32.gmra.mxu0 %v242
        %v282 = vpop.f32.mrf.mxu0
        %v283 = vadd.f32 0.0, %v282
        %284 = vmatmul.f32.gmra.mxu0 %v245
        %v285 = vpop.f32.mrf.mxu0
        %v286 = vadd.f32 0.0, %v285
        %287 = vmatmul.f32.gmra.mxu0 %v248
        %v288 = vpop.f32.mrf.mxu0
        %v289 = vadd.f32 0.0, %v288
        %290 = vmatmul.f32.gmra.mxu0 %v251
        %v291 = vpop.f32.mrf.mxu0
        %v292 = vadd.f32 0.0, %v291
        %293 = vmatmul.f32.gmra.mxu0 %v254
        %v294 = vpop.f32.mrf.mxu0
        %v295 = vadd.f32 0.0, %v294
        %296 = vmatmul.f32.gmra.mxu0 %v257
        %v297 = vpop.f32.mrf.mxu0
        %v298 = vadd.f32 0.0, %v297
        %299 = vdwg.mxu0
        %300 = vmatpush.msra.mxu0 0.0
        %301 = vmatpush.msra.mxu0 0.0
        %302 = vmatpush.msra.mxu0 0.0
        %303 = vmatpush.msra.mxu0 0.0
        %304 = vmatpush.msra.mxu0 0.0
        %305 = vmatpush.msra.mxu0 0.0
        %306 = vmatpush.msra.mxu0 0.0
        %307 = vmatpush.msra.mxu0 0.0
        %308 = vmatpush.msra.mxu0 0.0
        %309 = vmatpush.msra.mxu0 0.0
        %310 = vmatpush.msra.mxu0 0.0
        %311 = vmatpush.msra.mxu0 %v233
        %312 = vmatpush.msra.mxu0 %v231
        %313 = vmatpush.msra.mxu0 %v229
        %314 = vmatpush.msra.mxu0 %v227
        %315 = vmatpush.msra.mxu0 %v225
        %316 = vmatmul.f32.gmra.mxu0 %v236
        %v317 = vpop.f32.mrf.mxu0
        %v318 = vadd.f32 0.0, %v317
        %319 = vmatmul.f32.gmra.mxu0 %v239
        %v320 = vpop.f32.mrf.mxu0
        %v321 = vadd.f32 0.0, %v320
        %322 = vmatmul.f32.gmra.mxu0 %v242
        %v323 = vpop.f32.mrf.mxu0
        %v324 = vadd.f32 0.0, %v323
        %325 = vmatmul.f32.gmra.mxu0 %v245
        %v326 = vpop.f32.mrf.mxu0
        %v327 = vadd.f32 0.0, %v326
        %328 = vmatmul.f32.gmra.mxu0 %v248
        %v329 = vpop.f32.mrf.mxu0
        %v330 = vadd.f32 0.0, %v329
        %331 = vmatmul.f32.gmra.mxu0 %v251
        %v332 = vpop.f32.mrf.mxu0
        %v333 = vadd.f32 0.0, %v332
        %334 = vmatmul.f32.gmra.mxu0 %v254
        %v335 = vpop.f32.mrf.mxu0
        %v336 = vadd.f32 0.0, %v335
        %337 = vmatmul.f32.gmra.mxu0 %v257
        %v338 = vpop.f32.mrf.mxu0
        %v339 = vadd.f32 0.0, %v338
        %340 = vdwg.mxu0
        %v341 = vmin.f32 %v277, 0.0
        %v342 = vmin.f32 %v318, 0.0
        %v343 = vmin.f32 %v280, 0.0
        %v344 = vmin.f32 %v321, 0.0
        %v345 = vmin.f32 %v283, 0.0
        %v346 = vmin.f32 %v324, 0.0
        %v347 = vmin.f32 %v286, 0.0
        %v348 = vmin.f32 %v327, 0.0
        %v349 = vmin.f32 %v289, 0.0
        %v350 = vmin.f32 %v330, 0.0
        %v351 = vmin.f32 %v292, 0.0
        %v352 = vmin.f32 %v333, 0.0
        %v353 = vmin.f32 %v295, 0.0
        %v354 = vmin.f32 %v336, 0.0
        %v355 = vmin.f32 %v298, 0.0
        %v356 = vmin.f32 %v339, 0.0
        %v357 = vmul.f32 %v341, 1.442695
        %v358 = vpow.pop %v357
        %v359 = vmul.f32 %v342, 1.442695
        %v360 = vpow.pop %v359
        %v361 = vmul.f32 %v343, 1.442695
        %v362 = vpow.pop %v361
        %v363 = vmul.f32 %v344, 1.442695
        %v364 = vpow.pop %v363
        %v365 = vmul.f32 %v345, 1.442695
        %v366 = vpow.pop %v365
        %v367 = vmul.f32 %v346, 1.442695
        %v368 = vpow.pop %v367
        %v369 = vmul.f32 %v347, 1.442695
        %v370 = vpow.pop %v369
        %v371 = vmul.f32 %v348, 1.442695
        %v372 = vpow.pop %v371
        %v373 = vmul.f32 %v349, 1.442695
        %v374 = vpow.pop %v373
        %v375 = vmul.f32 %v350, 1.442695
        %v376 = vpow.pop %v375
        %v377 = vmul.f32 %v351, 1.442695
        %v378 = vpow.pop %v377
        %v379 = vmul.f32 %v352, 1.442695
        %v380 = vpow.pop %v379
        %v381 = vmul.f32 %v353, 1.442695
        %v382 = vpow.pop %v381
        %v383 = vmul.f32 %v354, 1.442695
        %v384 = vpow.pop %v383
        %v385 = vmul.f32 %v355, 1.442695
        %v386 = vpow.pop %v385
        %v387 = vmul.f32 %v356, 1.442695
        %v388 = vpow.pop %v387
        %v389 = vpack.c.bf16 %v362, %v358
        %v390 = vpack.c.bf16 %v364, %v360
        %v391 = vpack.c.bf16 %v370, %v366
        %v392 = vpack.c.bf16 %v372, %v368
        %v393 = vpack.c.bf16 %v378, %v374
        %v394 = vpack.c.bf16 %v380, %v376
        %v395 = vpack.c.bf16 %v386, %v382
        %v396 = vpack.c.bf16 %v388, %v384
        %v397 = vld [vmem:[%s2] sm:$0xf]
        %v398 = vld [vmem:[%s2 + $0x4] sm:$0xf]
        %v399 = vld [vmem:[%s2 + $0x8] sm:$0xf]
        %v400 = vld [vmem:[%s2 + $0xc] sm:$0xf]
        %v401 = vld [vmem:[%s2 + $0x10] sm:$0xf]
        %v402 = vld [vmem:[%s2 + $0x14] sm:$0xf]
        %v403 = vld [vmem:[%s2 + $0x18] sm:$0xf]
        %v404 = vld [vmem:[%s2 + $0x1c] sm:$0xf]
        %v405 = vld [vmem:[%s2 + $0x20] sm:$0xf]
        %v406 = vld [vmem:[%s2 + $0x24] sm:$0xf]
        %v407 = vld [vmem:[%s2 + $0x28] sm:$0xf]
        %v408 = vld [vmem:[%s2 + $0x2c] sm:$0xf]
        %v409 = vld [vmem:[%s2 + $0x30] sm:$0xf]
        %v410 = vld [vmem:[%s2 + $0x34] sm:$0xf]
        %v411 = vld [vmem:[%s2 + $0x38] sm:$0xf]
        %v412 = vld [vmem:[%s2 + $0x3c] sm:$0xf]
        %v413 = vld [vmem:[%s2 + $0x40] sm:$0xf]
        %v414 = vld [vmem:[%s2 + $0x44] sm:$0xf]
        %v415 = vld [vmem:[%s2 + $0x48] sm:$0xf]
        %v416 = vld [vmem:[%s2 + $0x4c] sm:$0xf]
        %v417 = vld [vmem:[%s2 + $0x50] sm:$0xf]
        %v418 = vld [vmem:[%s2 + $0x54] sm:$0xf]
        %v419 = vld [vmem:[%s2 + $0x58] sm:$0xf]
        %v420 = vld [vmem:[%s2 + $0x5c] sm:$0xf]
        %v421 = vld [vmem:[%s2 + $0x60] sm:$0xf]
        %v422 = vld [vmem:[%s2 + $0x64] sm:$0xf]
        %v423 = vld [vmem:[%s2 + $0x68] sm:$0xf]
        %v424 = vld [vmem:[%s2 + $0x6c] sm:$0xf]
        %v425 = vld [vmem:[%s2 + $0x70] sm:$0xf]
        %v426 = vld [vmem:[%s2 + $0x74] sm:$0xf]
        %v427 = vld [vmem:[%s2 + $0x78] sm:$0xf]
        %v428 = vld [vmem:[%s2 + $0x7c] sm:$0xf]
        %v429 = vld [vmem:[%s3] sm:$0x1]
        %v431 = vperm.slane %v429, 0
        %v465 = vunpack.c.l.b16 %v397
        %v466 = vunpack.c.l.b16 %v398
        %v467 = vunpack.c.l.b16 %v399
        %v468 = vunpack.c.l.b16 %v400
        %v469 = vunpack.c.l.b16 %v401
        %v470 = vunpack.c.l.b16 %v402
        %v471 = vunpack.c.l.b16 %v403
        %v472 = vunpack.c.l.b16 %v404
        %v473 = vunpack.c.l.b16 %v405
        %v474 = vunpack.c.l.b16 %v406
        %v475 = vunpack.c.l.b16 %v407
        %v476 = vunpack.c.l.b16 %v408
        %v477 = vunpack.c.l.b16 %v409
        %v478 = vunpack.c.l.b16 %v410
        %v479 = vunpack.c.l.b16 %v411
        %v480 = vunpack.c.l.b16 %v412
        %v481 = vunpack.c.l.b16 %v413
        %v482 = vunpack.c.l.b16 %v414
        %v483 = vunpack.c.l.b16 %v415
        %v484 = vunpack.c.l.b16 %v416
        %v485 = vunpack.c.l.b16 %v417
        %v486 = vunpack.c.l.b16 %v418
        %v487 = vunpack.c.l.b16 %v419
        %v488 = vunpack.c.l.b16 %v420
        %v489 = vunpack.c.l.b16 %v421
        %v490 = vunpack.c.l.b16 %v422
        %v491 = vunpack.c.l.b16 %v423
        %v492 = vunpack.c.l.b16 %v424
        %v493 = vunpack.c.l.b16 %v425
        %v494 = vunpack.c.l.b16 %v426
        %v495 = vunpack.c.l.b16 %v427
        %v496 = vunpack.c.l.b16 %v428
        %v497 = vpack.c.b16 %v466, %v465
        %v498 = vpack.c.b16 %v468, %v467
        %v499 = vpack.c.b16 %v470, %v469
        %v500 = vpack.c.b16 %v472, %v471
        %v501 = vpack.c.b16 %v474, %v473
        %v502 = vpack.c.b16 %v476, %v475
        %v503 = vpack.c.b16 %v478, %v477
        %v504 = vpack.c.b16 %v480, %v479
        %v505 = vpack.c.b16 %v482, %v481
        %v506 = vpack.c.b16 %v484, %v483
        %v507 = vpack.c.b16 %v486, %v485
        %v508 = vpack.c.b16 %v488, %v487
        %v509 = vpack.c.b16 %v490, %v489
        %v510 = vpack.c.b16 %v492, %v491
        %v511 = vpack.c.b16 %v494, %v493
        %v512 = vpack.c.b16 %v496, %v495
        %529 = vmatpush.bf16.msra.mxu0 %v504
        %530 = vmatpush.bf16.msra.mxu0 %v503
        %531 = vmatpush.bf16.msra.mxu0 %v502
        %532 = vmatpush.bf16.msra.mxu0 %v501
        %533 = vmatpush.bf16.msra.mxu0 %v500
        %534 = vmatpush.bf16.msra.mxu0 %v499
        %535 = vmatpush.bf16.msra.mxu0 %v498
        %536 = vmatpush.bf16.msra.mxu0 %v497
        %537 = vmatmul.bf16.gmra.mxu0 %v389
        %v538 = vpop.f32.mrf.mxu0
        %v539 = vadd.f32 %v431, %v538
        %v540 = vpop.f32.mrf.mxu0
        %v541 = vadd.f32 %v431, %v540
        %542 = vmatmul.bf16.gmra.mxu0 %v391
        %v543 = vpop.f32.mrf.mxu0
        %v544 = vadd.f32 %v431, %v543
        %v545 = vpop.f32.mrf.mxu0
        %v546 = vadd.f32 %v431, %v545
        %547 = vmatmul.bf16.gmra.mxu0 %v393
        %v548 = vpop.f32.mrf.mxu0
        %v549 = vadd.f32 %v431, %v548
        %v550 = vpop.f32.mrf.mxu0
        %v551 = vadd.f32 %v431, %v550
        %552 = vmatmul.bf16.gmra.mxu0 %v395
        %v553 = vpop.f32.mrf.mxu0
        %v554 = vadd.f32 %v431, %v553
        %v555 = vpop.f32.mrf.mxu0
        %v556 = vadd.f32 %v431, %v555
        %557 = vdwg.mxu0
        %558 = vmatpush.bf16.msra.mxu0 %v512
        %559 = vmatpush.bf16.msra.mxu0 %v511
        %560 = vmatpush.bf16.msra.mxu0 %v510
        %561 = vmatpush.bf16.msra.mxu0 %v509
        %562 = vmatpush.bf16.msra.mxu0 %v508
        %563 = vmatpush.bf16.msra.mxu0 %v507
        %564 = vmatpush.bf16.msra.mxu0 %v506
        %565 = vmatpush.bf16.msra.mxu0 %v505
        %566 = vmatmul.bf16.gmra.mxu0 %v390
        %v567 = vpop.f32.mrf.mxu0
        %v568 = vadd.f32 %v539, %v567
        %v569 = vpop.f32.mrf.mxu0
        %v570 = vadd.f32 %v541, %v569
        %571 = vmatmul.bf16.gmra.mxu0 %v392
        %v572 = vpop.f32.mrf.mxu0
        %v573 = vadd.f32 %v544, %v572
        %v574 = vpop.f32.mrf.mxu0
        %v575 = vadd.f32 %v546, %v574
        %576 = vmatmul.bf16.gmra.mxu0 %v394
        %v577 = vpop.f32.mrf.mxu0
        %v578 = vadd.f32 %v549, %v577
        %v579 = vpop.f32.mrf.mxu0
        %v580 = vadd.f32 %v551, %v579
        %581 = vmatmul.bf16.gmra.mxu0 %v396
        %v582 = vpop.f32.mrf.mxu0
        %v583 = vadd.f32 %v554, %v582
        %v584 = vpop.f32.mrf.mxu0
        %v585 = vadd.f32 %v556, %v584
        %586 = vdwg.mxu0
        %587 = vst [vmem:[%s208] sm:$0xff] %v568
        %588 = vst [vmem:[%s208 + $0x8] sm:$0xff] %v570
        %589 = vst [vmem:[%s208 + $0x10] sm:$0xff] %v573
        %590 = vst [vmem:[%s208 + $0x18] sm:$0xff] %v575
        %591 = vst [vmem:[%s208 + $0x20] sm:$0xff] %v578
        %592 = vst [vmem:[%s208 + $0x28] sm:$0xff] %v580
        %593 = vst [vmem:[%s208 + $0x30] sm:$0xff] %v583
        %594 = vst [vmem:[%s208 + $0x38] sm:$0xff] %v585
        %s595 = sand.u32 %s116, 1
        %s596 = scalar_lea.sflag [#allocation4], %s595
        %s597 = sand.u32 %s116, 1
        %s598 = smul.addr %s597, 64
        %s599 = scalar_lea.vmem [#allocation5], %s598
        // Predicated region
        $region41: #{tpu_custom_call.1} parent=35 // pred_check
          %p600 = pneg %p126
        $region42: #{tpu_custom_call.1} parent=35 // pred_check_branch
          %602 = sbr.rel (%p600) target = $region44
        $region43: #{tpu_custom_call.1} parent=35 // pred_region
          %s603 = smul.u32 8, %s19
          %605 = vsyncadd %s596, 0
          %s606 = smul.addr %s603, 8
          %s607 = scalar_lea.hbm %s4, %s606
          %s608 = sshll.u32 %s599, 4
          %s609 = int_to_ptr.vmem [resolvable:$true] %s608
          %s610 = sshll.u32 %s607, 4
          %s611 = int_to_ptr.hbm [resolvable:$true] %s610
          %616 = dma.vmem_to_hbm [thread:$0]  %s609, 1024, %s611, %s596, 128, 128, 8
        $region44: #{tpu_custom_call.1} parent=35 // pred_fallthru
          _
      $region36: #{tpu_custom_call.1} parent=5 // pred_fallthru
        _
      %p617 = scmp.le.s32.totalorder 2, %s14
      // Predicated region
      $region45: #{tpu_custom_call.1} parent=5 // pred_check
        %p618 = pneg %p617
      $region46: #{tpu_custom_call.1} parent=5 // pred_check_branch
        %620 = sbr.rel (%p618) target = $region48
      $region47: #{tpu_custom_call.1} parent=5 // pred_region
        %s621 = ssub.s32 %s14, 2
        // Predicated region
        $region49: #{tpu_custom_call.1} parent=47 // pred_check
          %p622 = pneg %p132
        $region50: #{tpu_custom_call.1} parent=47 // pred_check_branch
          %624 = sbr.rel (%p622) target = $region52
        $region51: #{tpu_custom_call.1} parent=47 // pred_region
          %s625 = sand.u32 %s117, 1
          %s626 = scalar_lea.sflag [#allocation4], %s625
          %s627 = sand.u32 %s117, 1
          %s628 = smul.addr %s627, 64
          %s629 = scalar_lea.vmem [#allocation5], %s628
          %631 = dma.done %s626, 1024
        $region52: #{tpu_custom_call.1} parent=47 // pred_fallthru
          _
      $region48: #{tpu_custom_call.1} parent=5 // pred_fallthru
        _
    $region6: #{tpu_custom_call.1} parent=1 // loop_footer
      %s18 = sadd.s32 1, %s14
    $region7: #{tpu_custom_call.1} parent=1 // loop_footer_branch
      %13 = sbr.rel target = $region3
    $region8: #{tpu_custom_call.1} parent=1 // loop_exit
      _
    %632 = vsyncpa [#allocation3], 1
    %s633 = scalar_lea.sflag [#allocation3], 1
    %634 = vsyncpa %s633, 1
    %635 = vsyncpa [#allocation4], 1
    %s636 = scalar_lea.sflag [#allocation4], 1
    %637 = vsyncpa %s636, 1

</llo_original>
